<compile_context>
chip_gen: v6e
topology: v6e:2x2x1
jax: 0.10.0
libtpu: 0.0.40
codegen_flags: <defaults>
</compile_context>

<pallas_src>
import jax
import jax.numpy as jnp
from jax.experimental import pallas as pl
from jax.experimental.pallas import tpu as pltpu


def _make_divisible(v: float, divisor: int, min_value=None) -> int:
    if min_value is None:
        min_value = divisor
    new_v = max(min_value, int(v + divisor / 2) // divisor * divisor)
    if new_v < 0.9 * v:
        new_v += divisor
    return new_v


def _se_kernel(x_ref, w1_ref, b1_ref, w2_ref, b2_ref, o_ref):
    # x_ref: (Bt, C, HW)   w1_ref: (C, Hd)  b1_ref: (1, Hd)
    # w2_ref: (Hd, C)      b2_ref: (1, C)   o_ref: (Bt, C, HW)

    # Global average pool over spatial (lane-axis reduce), accumulated in f32.
    # The f32 upcast is consumed here and is NOT kept live across the FCs.
    y = jnp.mean(x_ref[...].astype(jnp.float32), axis=-1)        # (Bt, C)

    # FC1 + ReLU  (batched (Bt,C)@(C,Hd) MXU matmul)
    h = jnp.dot(y, w1_ref[...], preferred_element_type=jnp.float32) + b1_ref[...]
    h = jnp.maximum(h, 0.0)

    # FC2 + h_sigmoid
    s = jnp.dot(h, w2_ref[...], preferred_element_type=jnp.float32) + b2_ref[...]
    s = jnp.clip(s + 3.0, 0.0, 6.0) * (1.0 / 6.0)                 # (Bt, C), f32

    # Re-read x and rescale in the input's native dtype (cast s down, not x up).
    x = x_ref[...]                                                # (Bt, C, HW)
    o_ref[...] = (x * s.astype(x.dtype)[:, :, None]).astype(o_ref.dtype)


def _choose_bt(B, C, HW, itemsize, target_bytes=1 << 20):
    """Images per grid step: ~1 MiB x-block, full blocks, >=2 grid slices if B>=2."""
    per_image = max(1, C * HW * itemsize)
    bt = max(1, min(B, target_bytes // per_image))
    while B % bt:          # keep every block full (no masked edge blocks)
        bt -= 1
    if B >= 2 and B // bt < 2:   # leave >=2 parallel slices for v7x's 2 TCs
        bt = max(1, bt // 2)
        while B % bt:
            bt -= 1
    return bt


def se_layer(x_nchw, w1, b1, w2, b2):
    """x_nchw: (B, C, H, W). Weights stored as (in, out) — i.e. W1 = fc1.weight.T."""
    B, C, H, W = x_nchw.shape
    HW = H * W
    Hd = w1.shape[1]
    x = x_nchw.reshape(B, C, HW)
    b1_2d = b1.reshape(1, Hd)
    b2_2d = b2.reshape(1, C)

    Bt = _choose_bt(B, C, HW, x.dtype.itemsize)
    grid = (B // Bt,)

    out = pl.pallas_call(
        _se_kernel,
        out_shape=jax.ShapeDtypeStruct((B, C, HW), x.dtype),
        grid_spec=pltpu.PrefetchScalarGridSpec(
            num_scalar_prefetch=0,
            grid=grid,
            in_specs=[
                pl.BlockSpec((Bt, C, HW), lambda b: (b, 0, 0)),  # x block (Bt images)
                pl.BlockSpec((C, Hd), lambda b: (0, 0)),         # W1 (resident)
                pl.BlockSpec((1, Hd), lambda b: (0, 0)),         # b1
                pl.BlockSpec((Hd, C), lambda b: (0, 0)),         # W2 (resident)
                pl.BlockSpec((1, C), lambda b: (0, 0)),          # b2
            ],
            out_specs=pl.BlockSpec((Bt, C, HW), lambda b: (b, 0, 0)),
        ),
        compiler_params=pltpu.CompilerParams(
            dimension_semantics=("parallel",),
        ),
    )(x, w1, b1_2d, w2, b2_2d)

    return out.reshape(B, C, H, W)


def se_layer_ref(x_nchw, w1, b1, w2, b2):
    """Pure-JAX reference for correctness check."""
    xf = x_nchw.astype(jnp.float32)
    y = jnp.mean(xf, axis=(2, 3))                    # (B, C)
    h = jnp.maximum(y @ w1 + b1, 0.0)
    s = jnp.clip(h @ w2 + b2 + 3.0, 0.0, 6.0) / 6.0
    return (x_nchw * s.astype(x_nchw.dtype)[:, :, None, None]).astype(x_nchw.dtype)


if __name__ == "__main__":
    B, C, H, W = 4, 16, 16, 16
    reduction = 4
    hidden = _make_divisible(C // reduction, 8)      # -> 8

    key = jax.random.PRNGKey(0)
    kx, k1, k2, k3, k4 = jax.random.split(key, 5)

    x = jax.random.normal(kx, (B, C, H, W), dtype=jnp.float32)
    # PyTorch Linear weight is (out, in); stored here as (in, out).
    w1 = jax.random.normal(k1, (C, hidden), dtype=jnp.float32) * 0.1
    b1 = jax.random.normal(k2, (hidden,), dtype=jnp.float32) * 0.1
    w2 = jax.random.normal(k3, (hidden, C), dtype=jnp.float32) * 0.1
    b2 = jax.random.normal(k4, (C,), dtype=jnp.float32) * 0.1

    out = se_layer(x, w1, b1, w2, b2)
    out = jax.block_until_ready(out)

    ref = se_layer_ref(x, w1, b1, w2, b2)
    assert out.shape == (B, C, H, W)
    assert jnp.allclose(out, ref, atol=1e-5, rtol=1e-5), "mismatch vs reference"

    print("KERNEL_OK")
</pallas_src>

<mosaic_0001>
module attributes {stable_mosaic.version = 11 : i64} {
  func.func @_se_kernel(%arg0: i32, %arg1: memref<2x16x256xf32, #tpu.memory_space<vmem>>, %arg2: memref<16x8xf32, #tpu.memory_space<vmem>>, %arg3: memref<1x8xf32, #tpu.memory_space<vmem>>, %arg4: memref<8x16xf32, #tpu.memory_space<vmem>>, %arg5: memref<1x16xf32, #tpu.memory_space<vmem>>, %arg6: memref<2x16x256xf32, #tpu.memory_space<vmem>>) attributes {dimension_semantics = [#tpu.dimension_semantics<parallel>], iteration_bounds = array<i64: 2>, scalar_prefetch = 0 : i64, scratch_operands = 0 : i64, tpu.core_type = #tpu.core_type<tc>, window_params = [{transform_indices = @transform_0, window_bounds = array<i64: 2, 16, 256>}, {pipeline_mode = #tpu.pipeline_mode<synchronous>, transform_indices = @transform_1, window_bounds = array<i64: 16, 8>}, {pipeline_mode = #tpu.pipeline_mode<synchronous>, transform_indices = @transform_2, window_bounds = array<i64: 1, 8>}, {pipeline_mode = #tpu.pipeline_mode<synchronous>, transform_indices = @transform_3, window_bounds = array<i64: 8, 16>}, {pipeline_mode = #tpu.pipeline_mode<synchronous>, transform_indices = @transform_4, window_bounds = array<i64: 1, 16>}, {transform_indices = @transform_5, window_bounds = array<i64: 2, 16, 256>}]} {
    %c0 = arith.constant 0 : index
    %c0_0 = arith.constant 0 : index
    %c0_1 = arith.constant 0 : index
    %0 = vector.load %arg1[%c0, %c0_0, %c0_1] : memref<2x16x256xf32, #tpu.memory_space<vmem>>, vector<2x16x256xf32>
    %cst = arith.constant dense<0.000000e+00> : vector<2x16xf32>
    %1 = vector.multi_reduction <add>, %0, %cst [2] : vector<2x16x256xf32> to vector<2x16xf32>
    %cst_2 = arith.constant 2.560000e+02 : f32
    %2 = vector.broadcast %cst_2 : f32 to vector<2x16xf32>
    %3 = arith.divf %1, %2 : vector<2x16xf32>
    %c0_3 = arith.constant 0 : index
    %c0_4 = arith.constant 0 : index
    %4 = vector.load %arg2[%c0_3, %c0_4] : memref<16x8xf32, #tpu.memory_space<vmem>>, vector<16x8xf32>
    %cst_5 = arith.constant dense<0.000000e+00> : vector<2x8xf32>
    %5 = tpu.matmul %3, %4, %cst_5 {dimension_numbers = #tpu.dot_dimension_numbers<[1], [0], [0], [1], [0, 0, 1, 1], [], []>} : vector<2x16xf32>, vector<16x8xf32>, vector<2x8xf32> -> vector<2x8xf32>
    %c0_6 = arith.constant 0 : index
    %c0_7 = arith.constant 0 : index
    %6 = vector.load %arg3[%c0_6, %c0_7] : memref<1x8xf32, #tpu.memory_space<vmem>>, vector<1x8xf32>
    %7 = vector.broadcast %6 : vector<1x8xf32> to vector<2x8xf32>
    %8 = arith.addf %5, %7 : vector<2x8xf32>
    %cst_8 = arith.constant 0.000000e+00 : f32
    %9 = vector.broadcast %cst_8 : f32 to vector<2x8xf32>
    %10 = arith.maximumf %8, %9 : vector<2x8xf32>
    %c0_9 = arith.constant 0 : index
    %c0_10 = arith.constant 0 : index
    %11 = vector.load %arg4[%c0_9, %c0_10] : memref<8x16xf32, #tpu.memory_space<vmem>>, vector<8x16xf32>
    %cst_11 = arith.constant dense<0.000000e+00> : vector<2x16xf32>
    %12 = tpu.matmul %10, %11, %cst_11 {dimension_numbers = #tpu.dot_dimension_numbers<[1], [0], [0], [1], [0, 0, 1, 1], [], []>} : vector<2x8xf32>, vector<8x16xf32>, vector<2x16xf32> -> vector<2x16xf32>
    %c0_12 = arith.constant 0 : index
    %c0_13 = arith.constant 0 : index
    %13 = vector.load %arg5[%c0_12, %c0_13] : memref<1x16xf32, #tpu.memory_space<vmem>>, vector<1x16xf32>
    %14 = vector.broadcast %13 : vector<1x16xf32> to vector<2x16xf32>
    %15 = arith.addf %12, %14 : vector<2x16xf32>
    %cst_14 = arith.constant 3.000000e+00 : f32
    %16 = vector.broadcast %cst_14 : f32 to vector<2x16xf32>
    %17 = arith.addf %15, %16 : vector<2x16xf32>
    %cst_15 = arith.constant 0.000000e+00 : f32
    %cst_16 = arith.constant 6.000000e+00 : f32
    %18 = vector.broadcast %cst_15 : f32 to vector<2x16xf32>
    %19 = arith.maximumf %18, %17 : vector<2x16xf32>
    %20 = vector.broadcast %cst_16 : f32 to vector<2x16xf32>
    %21 = arith.minimumf %20, %19 : vector<2x16xf32>
    %cst_17 = arith.constant 0.166666672 : f32
    %22 = vector.broadcast %cst_17 : f32 to vector<2x16xf32>
    %23 = arith.mulf %21, %22 : vector<2x16xf32>
    %c0_18 = arith.constant 0 : index
    %c0_19 = arith.constant 0 : index
    %c0_20 = arith.constant 0 : index
    %24 = vector.load %arg1[%c0_18, %c0_19, %c0_20] : memref<2x16x256xf32, #tpu.memory_space<vmem>>, vector<2x16x256xf32>
    %25 = vector.shape_cast %23 : vector<2x16xf32> to vector<2x16x1xf32>
    %26 = vector.broadcast %25 : vector<2x16x1xf32> to vector<2x16x256xf32>
    %27 = arith.mulf %24, %26 : vector<2x16x256xf32>
    %c0_21 = arith.constant 0 : index
    %c0_22 = arith.constant 0 : index
    %c0_23 = arith.constant 0 : index
    %28 = vector.load %arg6[%c0_21, %c0_22, %c0_23] : memref<2x16x256xf32, #tpu.memory_space<vmem>>, vector<2x16x256xf32>
    tpu.vector_store %arg6[%c0_21, %c0_22, %c0_23], %27 {strides = array<i32>} : memref<2x16x256xf32, #tpu.memory_space<vmem>>, vector<2x16x256xf32>,
    return
  }
  func.func @transform_0(%arg0: i32) -> (i32, i32, i32) {
    %c0_i32 = arith.constant 0 : i32
    %c0_i32_0 = arith.constant 0 : i32
    %c0_i32_1 = arith.constant 0 : i32
    return %arg0, %c0_i32, %c0_i32_0 : i32, i32, i32
  }
  func.func @transform_1(%arg0: i32) -> (i32, i32) {
    %c0_i32 = arith.constant 0 : i32
    %c0_i32_0 = arith.constant 0 : i32
    %c0_i32_1 = arith.constant 0 : i32
    return %c0_i32, %c0_i32_0 : i32, i32
  }
  func.func @transform_2(%arg0: i32) -> (i32, i32) {
    %c0_i32 = arith.constant 0 : i32
    %c0_i32_0 = arith.constant 0 : i32
    %c0_i32_1 = arith.constant 0 : i32
    return %c0_i32, %c0_i32_0 : i32, i32
  }
  func.func @transform_3(%arg0: i32) -> (i32, i32) {
    %c0_i32 = arith.constant 0 : i32
    %c0_i32_0 = arith.constant 0 : i32
    %c0_i32_1 = arith.constant 0 : i32
    return %c0_i32, %c0_i32_0 : i32, i32
  }
  func.func @transform_4(%arg0: i32) -> (i32, i32) {
    %c0_i32 = arith.constant 0 : i32
    %c0_i32_0 = arith.constant 0 : i32
    %c0_i32_1 = arith.constant 0 : i32
    return %c0_i32, %c0_i32_0 : i32, i32
  }
  func.func @transform_5(%arg0: i32) -> (i32, i32, i32) {
    %c0_i32 = arith.constant 0 : i32
    %c0_i32_0 = arith.constant 0 : i32
    %c0_i32_1 = arith.constant 0 : i32
    return %arg0, %c0_i32, %c0_i32_0 : i32, i32, i32
  }
}

</mosaic_0001>

<llo_original>
// kernel: tpu_custom_call.1
$region0: #{tpu_custom_call.1}
  #allocation0 [shape = 'u32[]', space=smem, size = 0x4, offset = 0x4, fixed_abs, tag = 'smem constant byte address 0x4 - core index']
  #allocation1 [shape = 'u32[144,128]{1,0:T(1,128)}', space=vmem, size = 0x12000, scoped, tag = 'internal scratch']
  %s0 = inlined_call_operand.hbm [shape: f32[4,16,256], index: 0, kind: input, shape index: {}]
  %s1 = inlined_call_operand.vmem [shape: f32[16,8], index: 1, kind: input, shape index: {}]
  %s2 = inlined_call_operand.vmem [shape: f32[1,8], index: 2, kind: input, shape index: {}]
  %s3 = inlined_call_operand.vmem [shape: f32[8,16], index: 3, kind: input, shape index: {}]
  %s4 = inlined_call_operand.vmem [shape: f32[1,16], index: 4, kind: input, shape index: {}]
  %s5 = inlined_call_operand.hbm [shape: f32[4,16,256], index: 5, kind: output, shape index: {}]
  %s6 = sld [smem:[#allocation0]]
  $region57: #{tpu_custom_call.1} parent=0
    _
  %s8 = ssub.s32 1, %s6
  %s9 = scalar_select 0, %s8, %s6
  $region1: #{tpu_custom_call.1} parent=0
    #allocation2 [shape = 'u8[65536]{0}', space=vmem, size = 0x10000, scoped, tag = 'input window, operand 0']
    #allocation3 [shape = 's32[2]{0}', space=sflag, size = 0x8, scoped, tag = 'scoped memory for tpu_custom_call.1']
    #allocation4 [shape = 's32[2]{0}', space=sflag, size = 0x8, scoped, tag = 'scoped memory for tpu_custom_call.1']
    #allocation5 [shape = 'u8[65536]{0}', space=vmem, size = 0x10000, scoped, tag = 'output window, operand 0']
    %10 = vsyncpa [#allocation3], 0
    %s11 = scalar_lea.sflag [#allocation3], 1
    %12 = vsyncpa %s11, 0
    %13 = vsyncpa [#allocation4], 0
    %s14 = scalar_lea.sflag [#allocation4], 1
    %15 = vsyncpa %s14, 0
    loop: start=0, step=1, limit=4
    $region2: #{tpu_custom_call.1} parent=1 // loop_pre_header
      _
    $region3: #{tpu_custom_call.1} parent=1 // loop_header
      %s17 = sphi 0, %s21
      %p18 = scmp.ge.s32.totalorder %s17, 4
      %s27 = sphi 0, %s29
      %s30 = sphi 0, %s27
      %s31 = sphi 0, %s30
      %s47 = sphi 0, %s31
      %s51 = sphi 0, %s51
      %s53 = sphi 0, %s51
      %s54 = sphi 0, %s53
      %s68 = sphi 0, %s54
      %s72 = sphi 0, %s72
      %s74 = sphi 0, %s72
      %s75 = sphi 0, %s74
      %s89 = sphi 0, %s75
      %s93 = sphi 0, %s93
      %s95 = sphi 0, %s93
      %s96 = sphi 0, %s95
      %s110 = sphi 0, %s96
      %s114 = sphi 0, %s114
      %s116 = sphi 0, %s114
      %s117 = sphi 0, %s116
      %s131 = sphi 0, %s117
      %s137 = sphi 0, %s139
      %s140 = sphi 0, %s137
      %s141 = sphi 0, %s140
      %s157 = sphi 0, %s141
    $region4: #{tpu_custom_call.1} parent=1 // loop_header_branch
      %20 = sbr.rel (%p18) target = $region8
    $region5: #{tpu_custom_call.1} parent=1 // loop_body
      %s22 = ssub.s32 %s17, 1
      %s23 = ssub.s32 %s17, 2
      %s24 = sadd.s32 %s17, 1
      %s25 = ssub.s32 %s17, %s24
      %p26 = scmp.eq.s32.totalorder %s25, 0
      %s28 = sadd.s32 %s27, 1
      %s29 = scalar_select %p26, %s27, %s28
      %p32 = pneg %p26
      %p33 = scmp.eq.s32.totalorder %s17, 1
      %p34 = por %p32, %p33
      %p35 = scmp.ne.s32.totalorder %s27, %s30
      %p36 = scmp.eq.s32.totalorder %s17, 0
      %p37 = por %p35, %p36
      %p38 = scmp.ne.s32.totalorder %s27, %s30
      %p39 = scmp.eq.s32.totalorder %s22, 1
      %p40 = por %p38, %p39
      %p41 = scmp.ne.s32.totalorder %s30, %s31
      %p42 = scmp.eq.s32.totalorder %s22, 0
      %p43 = por %p41, %p42
      %p44 = scmp.ne.s32.totalorder %s30, %s31
      %p45 = scmp.eq.s32.totalorder %s23, 1
      %p46 = por %p44, %p45
      %p48 = scmp.ne.s32.totalorder %s31, %s47
      %p49 = scmp.eq.s32.totalorder %s23, 0
      %p50 = por %p48, %p49
      %s52 = sadd.s32 %s51, 1
      %p55 = scmp.eq.s32.totalorder %s17, 1
      %p56 = scmp.ne.s32.totalorder %s51, %s53
      %p57 = scmp.eq.s32.totalorder %s17, 0
      %p58 = por %p56, %p57
      %p59 = scmp.ne.s32.totalorder %s51, %s53
      %p60 = scmp.eq.s32.totalorder %s22, 1
      %p61 = por %p59, %p60
      %p62 = scmp.ne.s32.totalorder %s53, %s54
      %p63 = scmp.eq.s32.totalorder %s22, 0
      %p64 = por %p62, %p63
      %p65 = scmp.ne.s32.totalorder %s53, %s54
      %p66 = scmp.eq.s32.totalorder %s23, 1
      %p67 = por %p65, %p66
      %p69 = scmp.ne.s32.totalorder %s54, %s68
      %p70 = scmp.eq.s32.totalorder %s23, 0
      %p71 = por %p69, %p70
      %s73 = sadd.s32 %s72, 1
      %p76 = scmp.eq.s32.totalorder %s17, 1
      %p77 = scmp.ne.s32.totalorder %s72, %s74
      %p78 = scmp.eq.s32.totalorder %s17, 0
      %p79 = por %p77, %p78
      %p80 = scmp.ne.s32.totalorder %s72, %s74
      %p81 = scmp.eq.s32.totalorder %s22, 1
      %p82 = por %p80, %p81
      %p83 = scmp.ne.s32.totalorder %s74, %s75
      %p84 = scmp.eq.s32.totalorder %s22, 0
      %p85 = por %p83, %p84
      %p86 = scmp.ne.s32.totalorder %s74, %s75
      %p87 = scmp.eq.s32.totalorder %s23, 1
      %p88 = por %p86, %p87
      %p90 = scmp.ne.s32.totalorder %s75, %s89
      %p91 = scmp.eq.s32.totalorder %s23, 0
      %p92 = por %p90, %p91
      %s94 = sadd.s32 %s93, 1
      %p97 = scmp.eq.s32.totalorder %s17, 1
      %p98 = scmp.ne.s32.totalorder %s93, %s95
      %p99 = scmp.eq.s32.totalorder %s17, 0
      %p100 = por %p98, %p99
      %p101 = scmp.ne.s32.totalorder %s93, %s95
      %p102 = scmp.eq.s32.totalorder %s22, 1
      %p103 = por %p101, %p102
      %p104 = scmp.ne.s32.totalorder %s95, %s96
      %p105 = scmp.eq.s32.totalorder %s22, 0
      %p106 = por %p104, %p105
      %p107 = scmp.ne.s32.totalorder %s95, %s96
      %p108 = scmp.eq.s32.totalorder %s23, 1
      %p109 = por %p107, %p108
      %p111 = scmp.ne.s32.totalorder %s96, %s110
      %p112 = scmp.eq.s32.totalorder %s23, 0
      %p113 = por %p111, %p112
      %s115 = sadd.s32 %s114, 1
      %p118 = scmp.eq.s32.totalorder %s17, 1
      %p119 = scmp.ne.s32.totalorder %s114, %s116
      %p120 = scmp.eq.s32.totalorder %s17, 0
      %p121 = por %p119, %p120
      %p122 = scmp.ne.s32.totalorder %s114, %s116
      %p123 = scmp.eq.s32.totalorder %s22, 1
      %p124 = por %p122, %p123
      %p125 = scmp.ne.s32.totalorder %s116, %s117
      %p126 = scmp.eq.s32.totalorder %s22, 0
      %p127 = por %p125, %p126
      %p128 = scmp.ne.s32.totalorder %s116, %s117
      %p129 = scmp.eq.s32.totalorder %s23, 1
      %p130 = por %p128, %p129
      %p132 = scmp.ne.s32.totalorder %s117, %s131
      %p133 = scmp.eq.s32.totalorder %s23, 0
      %p134 = por %p132, %p133
      %s135 = ssub.s32 %s17, %s24
      %p136 = scmp.eq.s32.totalorder %s135, 0
      %s138 = sadd.s32 %s137, 1
      %s139 = scalar_select %p136, %s137, %s138
      %p142 = pneg %p136
      %p143 = scmp.eq.s32.totalorder %s17, 1
      %p144 = por %p142, %p143
      %p145 = scmp.ne.s32.totalorder %s137, %s140
      %p146 = scmp.eq.s32.totalorder %s17, 0
      %p147 = por %p145, %p146
      %p148 = scmp.ne.s32.totalorder %s137, %s140
      %p149 = scmp.eq.s32.totalorder %s22, 1
      %p150 = por %p148, %p149
      %p151 = scmp.ne.s32.totalorder %s140, %s141
      %p152 = scmp.eq.s32.totalorder %s22, 0
      %p153 = por %p151, %p152
      %p154 = scmp.ne.s32.totalorder %s140, %s141
      %p155 = scmp.eq.s32.totalorder %s23, 1
      %p156 = por %p154, %p155
      %p158 = scmp.ne.s32.totalorder %s141, %s157
      %p159 = scmp.eq.s32.totalorder %s23, 0
      %p160 = por %p158, %p159
      %p161 = scmp.le.s32.totalorder 1, %s17
      %p162 = scmp.lt.s32.totalorder %s17, 3
      %p163 = pnand %p161, %p162
      %p164 = pneg %p163
      // Predicated region
      $region9: #{tpu_custom_call.1} parent=5 // pred_check
        _
      $region10: #{tpu_custom_call.1} parent=5 // pred_check_branch
        %166 = sbr.rel (%p163) target = $region12
      $region11: #{tpu_custom_call.1} parent=5 // pred_region
        %s167 = ssub.s32 %s17, 1
        // Predicated region
        $region13: #{tpu_custom_call.1} parent=11 // pred_check
          %p168 = pneg %p64
        $region14: #{tpu_custom_call.1} parent=11 // pred_check_branch
          %170 = sbr.rel (%p168) target = $region16
        $region15: #{tpu_custom_call.1} parent=11 // pred_region
          _
        $region16: #{tpu_custom_call.1} parent=11 // pred_fallthru
          _
        // Predicated region
        $region17: #{tpu_custom_call.1} parent=11 // pred_check
          %p171 = pneg %p85
        $region18: #{tpu_custom_call.1} parent=11 // pred_check_branch
          %173 = sbr.rel (%p171) target = $region20
        $region19: #{tpu_custom_call.1} parent=11 // pred_region
          _
        $region20: #{tpu_custom_call.1} parent=11 // pred_fallthru
          _
        // Predicated region
        $region21: #{tpu_custom_call.1} parent=11 // pred_check
          %p174 = pneg %p106
        $region22: #{tpu_custom_call.1} parent=11 // pred_check_branch
          %176 = sbr.rel (%p174) target = $region24
        $region23: #{tpu_custom_call.1} parent=11 // pred_region
          _
        $region24: #{tpu_custom_call.1} parent=11 // pred_fallthru
          _
        // Predicated region
        $region25: #{tpu_custom_call.1} parent=11 // pred_check
          %p177 = pneg %p127
        $region26: #{tpu_custom_call.1} parent=11 // pred_check_branch
          %179 = sbr.rel (%p177) target = $region28
        $region27: #{tpu_custom_call.1} parent=11 // pred_region
          _
        $region28: #{tpu_custom_call.1} parent=11 // pred_fallthru
          _
      $region12: #{tpu_custom_call.1} parent=5 // pred_fallthru
        _
      %p180 = scmp.lt.s32.totalorder %s17, 2
      // Predicated region
      $region29: #{tpu_custom_call.1} parent=5 // pred_check
        %p181 = pneg %p180
      $region30: #{tpu_custom_call.1} parent=5 // pred_check_branch
        %183 = sbr.rel (%p181) target = $region32
      $region31: #{tpu_custom_call.1} parent=5 // pred_region
        // Predicated region
        $region33: #{tpu_custom_call.1} parent=31 // pred_check
          %p184 = pneg %p37
        $region34: #{tpu_custom_call.1} parent=31 // pred_check_branch
          %186 = sbr.rel (%p184) target = $region36
        $region35: #{tpu_custom_call.1} parent=31 // pred_region
          %s187 = sand.u32 %s27, 1
          %s188 = scalar_lea.sflag [#allocation3], %s187
          %s189 = sand.u32 %s27, 1
          %s190 = smul.addr %s189, 64
          %s191 = scalar_lea.vmem [#allocation2], %s190
          %s192 = smul.u32 2, %s17
          %s194 = ssub.s32 1024, 1024
          %195 = vsyncadd %s188, %s194
          %s196 = smul.addr %s192, 4
          %s197 = smul.addr %s196, 128
          %s198 = scalar_lea.hbm %s0, %s197
          %s199 = sshll.u32 %s191, 4
          %s200 = int_to_ptr.vmem [resolvable:$true] %s199
          %205 = dma.hbm_to_vmem [thread:$0]  %s198, 1024, %s200, %s188, 256, 256, 16
        $region36: #{tpu_custom_call.1} parent=31 // pred_fallthru
          _
      $region32: #{tpu_custom_call.1} parent=5 // pred_fallthru
        _
      %p206 = scmp.le.s32.totalorder 1, %s17
      %p207 = scmp.lt.s32.totalorder %s17, 3
      %p208 = pnand %p206, %p207
      %p209 = pneg %p208
      // Predicated region
      $region37: #{tpu_custom_call.1} parent=5 // pred_check
        _
      $region38: #{tpu_custom_call.1} parent=5 // pred_check_branch
        %211 = sbr.rel (%p208) target = $region40
      $region39: #{tpu_custom_call.1} parent=5 // pred_region
        %s212 = ssub.s32 %s17, 1
        %s213 = sand.u32 %s30, 1
        %s214 = scalar_lea.sflag [#allocation3], %s213
        %s215 = sand.u32 %s30, 1
        %s216 = smul.addr %s215, 64
        %s217 = scalar_lea.vmem [#allocation2], %s216
        // Predicated region
        $region41: #{tpu_custom_call.1} parent=39 // pred_check
          %p218 = pneg %p43
        $region42: #{tpu_custom_call.1} parent=39 // pred_check_branch
          %220 = sbr.rel (%p218) target = $region44
        $region43: #{tpu_custom_call.1} parent=39 // pred_region
          %221 = dma.done %s214, 1024
        $region44: #{tpu_custom_call.1} parent=39 // pred_fallthru
          _
        %s222 = sand.u32 %s30, 1
        %s223 = scalar_lea.sflag [#allocation3], %s222
        %s224 = sand.u32 %s30, 1
        %s225 = smul.addr %s224, 64
        %s226 = scalar_lea.vmem [#allocation2], %s225
        %p227 = pneg %p43
        %p228 = pneg %p40
        %p229 = pneg %p64
        %p230 = pneg %p61
        %p231 = pneg %p85
        %p232 = pneg %p82
        %p233 = pneg %p106
        %p234 = pneg %p103
        %p235 = pneg %p127
        %p236 = pneg %p124
        %p237 = pneg %p153
        %p238 = pneg %p150
        %s239 = sand.u32 %s140, 1
        %s240 = scalar_lea.sflag [#allocation4], %s239
        %s241 = sand.u32 %s140, 1
        %s242 = smul.addr %s241, 64
        %s243 = scalar_lea.vmem [#allocation5], %s242
        %s244 = smul.u32 2, %s22
        %s245 = smul.u32 2, %s22
        %v246 = vld [vmem:[%s217] sm:$0xff]
        %v247 = vld [vmem:[%s217 + $0x8] sm:$0xff]
        %v248 = vld [vmem:[%s217 + $0x10] sm:$0xff]
        %v249 = vld [vmem:[%s217 + $0x18] sm:$0xff]
        %v250 = vld [vmem:[%s217 + $0x20] sm:$0xff]
        %v251 = vld [vmem:[%s217 + $0x28] sm:$0xff]
        %v252 = vld [vmem:[%s217 + $0x30] sm:$0xff]
        %v253 = vld [vmem:[%s217 + $0x38] sm:$0xff]
        %v254 = vadd.f32 %v246, %v247
        %255 = vadd.xlane.f32.xlu0 %v254
        %v256 = vpop.xlane.xlu0 %255
        %v257 = vadd.f32 %v248, %v249
        %258 = vadd.xlane.f32.xlu0 %v257
        %v259 = vpop.xlane.xlu0 %258
        %v260 = vadd.f32 %v250, %v251
        %261 = vadd.xlane.f32.xlu0 %v260
        %v262 = vpop.xlane.xlu0 %261
        %v263 = vadd.f32 %v252, %v253
        %264 = vadd.xlane.f32.xlu0 %v263
        %v265 = vpop.xlane.xlu0 %264
        %v266 = vrcp.pop 256.0
        %v267 = vmul.f32 %v256, %v266
        %v268 = vmul.f32 %v259, %v266
        %v269 = vmul.f32 %v262, %v266
        %v270 = vmul.f32 %v265, %v266
        %v271 = vld [vmem:[%s1] sm:$0xff]
        %v272 = vld [vmem:[%s1 + $0x8] sm:$0xff]
        %v273 = vld [vmem:[%s2] sm:$0x1]
        %v275 = vlaneseq
        %v276 = vshrl.u32 %v275, 7
        %v277 = vsub.s32 0, %v276
        %v278 = vrot.slane %v273, %v277
        %v284 = vlaneseq
        %v285 = vand.u32 %v284, 127
        %v286 = vlaneseq
        %v287 = vshrl.u32 %v286, 7
        %v288 = vsub.s32 %v285, %v287
        %v289 = vrot.slane %v267, %v288
        %v290 = vadd.s32 %v285, 4294967288
        %v291 = vlaneseq
        %v292 = vshrl.u32 %v291, 7
        %v293 = vsub.s32 %v290, %v292
        %v294 = vrot.slane %v268, %v293
        %vm295 = vcmask 130112
        %v296 = vsel %vm295, %v294, %v289
        %v297 = vlaneseq
        %v298 = vshrl.u32 %v297, 7
        %v299 = vsub.s32 %v285, %v298
        %v300 = vrot.slane %v269, %v299
        %v301 = vlaneseq
        %v302 = vshrl.u32 %v301, 7
        %v303 = vsub.s32 %v290, %v302
        %v304 = vrot.slane %v270, %v303
        %v305 = vsel %vm295, %v304, %v300
        %vm306 = vcmask 1041409
        %v307 = vsel %vm306, %v305, %v296
        %vm308 = vcmask 130048
        %v309 = vsel %vm308, %v307, 0
        %311 = vmatprep.subr.mxu0 0.0
        %312 = vmatpush1.msra.mxu0 0.0
        %313 = vmatprep.subr.mxu0 0.0
        %314 = vmatpush1.msra.mxu0 0.0
        %315 = vmatprep.subr.mxu0 0.0
        %316 = vmatpush1.msra.mxu0 0.0
        %317 = vmatprep.subr.mxu0 0.0
        %318 = vmatpush1.msra.mxu0 0.0
        %319 = vmatprep.subr.mxu0 0.0
        %320 = vmatpush1.msra.mxu0 0.0
        %321 = vmatprep.subr.mxu0 0.0
        %322 = vmatpush1.msra.mxu0 0.0
        %323 = vmatprep.subr.mxu0 0.0
        %324 = vmatpush1.msra.mxu0 0.0
        %325 = vmatprep.subr.mxu0 0.0
        %326 = vmatpush1.msra.mxu0 0.0
        %327 = vmatprep.subr.mxu0 0.0
        %328 = vmatpush1.msra.mxu0 0.0
        %329 = vmatprep.subr.mxu0 0.0
        %330 = vmatpush1.msra.mxu0 0.0
        %331 = vmatprep.subr.mxu0 0.0
        %332 = vmatpush1.msra.mxu0 0.0
        %333 = vmatprep.subr.mxu0 0.0
        %334 = vmatpush1.msra.mxu0 0.0
        %335 = vmatprep.subr.mxu0 0.0
        %336 = vmatpush1.msra.mxu0 0.0
        %337 = vmatprep.subr.mxu0 0.0
        %338 = vmatpush1.msra.mxu0 0.0
        %339 = vmatprep.subr.mxu0 0.0
        %340 = vmatpush1.msra.mxu0 %v272
        %341 = vmatprep.subr.mxu0 0.0
        %342 = vmatpush1.msra.mxu0 %v271
        %343 = vmatprep.subr.mxu0 0.0
        %344 = vmatpush2.msra.mxu0 0.0
        %345 = vmatprep.subr.mxu0 0.0
        %346 = vmatpush2.msra.mxu0 0.0
        %347 = vmatprep.subr.mxu0 0.0
        %348 = vmatpush2.msra.mxu0 0.0
        %349 = vmatprep.subr.mxu0 0.0
        %350 = vmatpush2.msra.mxu0 0.0
        %351 = vmatprep.subr.mxu0 0.0
        %352 = vmatpush2.msra.mxu0 0.0
        %353 = vmatprep.subr.mxu0 0.0
        %354 = vmatpush2.msra.mxu0 0.0
        %355 = vmatprep.subr.mxu0 0.0
        %356 = vmatpush2.msra.mxu0 0.0
        %357 = vmatprep.subr.mxu0 0.0
        %358 = vmatpush2.msra.mxu0 0.0
        %359 = vmatprep.subr.mxu0 0.0
        %360 = vmatpush2.msra.mxu0 0.0
        %361 = vmatprep.subr.mxu0 0.0
        %362 = vmatpush2.msra.mxu0 0.0
        %363 = vmatprep.subr.mxu0 0.0
        %364 = vmatpush2.msra.mxu0 0.0
        %365 = vmatprep.subr.mxu0 0.0
        %366 = vmatpush2.msra.mxu0 0.0
        %367 = vmatprep.subr.mxu0 0.0
        %368 = vmatpush2.msra.mxu0 0.0
        %369 = vmatprep.subr.mxu0 0.0
        %370 = vmatpush2.msra.mxu0 0.0
        %371 = vmatprep.subr.mxu0 0.0
        %372 = vmatpush2.msra.mxu0 0.0
        %373 = vmatprep.subr.mxu0 0.0
        %374 = vmatpush2.msra.mxu0 0.0
        %375 = vmatprep.mubr.f32.mxu0 0.0
        %376 = vmatmul.mubr.f32.gmra.mxu0 %v309
        %v377 = vpop.f32.mrf.mxu0
        %v378 = vadd.f32 %v278, %v377
        %v379 = vpop.f32.mrf.mxu0
        %380 = vdwg.mxu0
        %v381 = vmax.f32 %v378, 0.0
        %v382 = vld [vmem:[%s3] sm:$0xff]
        %v383 = vld [vmem:[%s4] sm:$0x1]
        %v385 = vlaneseq
        %v386 = vshrl.u32 %v385, 7
        %v387 = vsub.s32 0, %v386
        %v388 = vrot.slane %v383, %v387
        %vm390 = vcmask 64512
        %v392 = vsel %vm390, %v381, 0
        %394 = vmatprep.subr.mxu0 0.0
        %395 = vmatpush1.msra.mxu0 0.0
        %396 = vmatprep.subr.mxu0 0.0
        %397 = vmatpush1.msra.mxu0 0.0
        %398 = vmatprep.subr.mxu0 0.0
        %399 = vmatpush1.msra.mxu0 0.0
        %400 = vmatprep.subr.mxu0 0.0
        %401 = vmatpush1.msra.mxu0 0.0
        %402 = vmatprep.subr.mxu0 0.0
        %403 = vmatpush1.msra.mxu0 0.0
        %404 = vmatprep.subr.mxu0 0.0
        %405 = vmatpush1.msra.mxu0 0.0
        %406 = vmatprep.subr.mxu0 0.0
        %407 = vmatpush1.msra.mxu0 0.0
        %408 = vmatprep.subr.mxu0 0.0
        %409 = vmatpush1.msra.mxu0 0.0
        %410 = vmatprep.subr.mxu0 0.0
        %411 = vmatpush1.msra.mxu0 0.0
        %412 = vmatprep.subr.mxu0 0.0
        %413 = vmatpush1.msra.mxu0 0.0
        %414 = vmatprep.subr.mxu0 0.0
        %415 = vmatpush1.msra.mxu0 0.0
        %416 = vmatprep.subr.mxu0 0.0
        %417 = vmatpush1.msra.mxu0 0.0
        %418 = vmatprep.subr.mxu0 0.0
        %419 = vmatpush1.msra.mxu0 0.0
        %420 = vmatprep.subr.mxu0 0.0
        %421 = vmatpush1.msra.mxu0 0.0
        %422 = vmatprep.subr.mxu0 0.0
        %423 = vmatpush1.msra.mxu0 0.0
        %424 = vmatprep.subr.mxu0 0.0
        %425 = vmatpush1.msra.mxu0 %v382
        %426 = vmatprep.subr.mxu0 0.0
        %427 = vmatpush2.msra.mxu0 0.0
        %428 = vmatprep.subr.mxu0 0.0
        %429 = vmatpush2.msra.mxu0 0.0
        %430 = vmatprep.subr.mxu0 0.0
        %431 = vmatpush2.msra.mxu0 0.0
        %432 = vmatprep.subr.mxu0 0.0
        %433 = vmatpush2.msra.mxu0 0.0
        %434 = vmatprep.subr.mxu0 0.0
        %435 = vmatpush2.msra.mxu0 0.0
        %436 = vmatprep.subr.mxu0 0.0
        %437 = vmatpush2.msra.mxu0 0.0
        %438 = vmatprep.subr.mxu0 0.0
        %439 = vmatpush2.msra.mxu0 0.0
        %440 = vmatprep.subr.mxu0 0.0
        %441 = vmatpush2.msra.mxu0 0.0
        %442 = vmatprep.subr.mxu0 0.0
        %443 = vmatpush2.msra.mxu0 0.0
        %444 = vmatprep.subr.mxu0 0.0
        %445 = vmatpush2.msra.mxu0 0.0
        %446 = vmatprep.subr.mxu0 0.0
        %447 = vmatpush2.msra.mxu0 0.0
        %448 = vmatprep.subr.mxu0 0.0
        %449 = vmatpush2.msra.mxu0 0.0
        %450 = vmatprep.subr.mxu0 0.0
        %451 = vmatpush2.msra.mxu0 0.0
        %452 = vmatprep.subr.mxu0 0.0
        %453 = vmatpush2.msra.mxu0 0.0
        %454 = vmatprep.subr.mxu0 0.0
        %455 = vmatpush2.msra.mxu0 0.0
        %456 = vmatprep.subr.mxu0 0.0
        %457 = vmatpush2.msra.mxu0 0.0
        %458 = vmatprep.mubr.f32.mxu0 0.0
        %459 = vmatmul.mubr.f32.gmra.mxu0 %v392
        %v460 = vpop.f32.mrf.mxu0
        %v461 = vadd.f32 %v388, %v460
        %v462 = vpop.f32.mrf.mxu0
        %463 = vdwg.mxu0
        %v464 = vadd.f32 %v461, 3.0
        %v465 = vmax.f32 %v464, 0.0
        %v466 = vmin.f32 %v465, 6.0
        %v467 = vmul.f32 %v466, 0.16666667
        %v468 = vlaneseq
        %v469 = vshrl.u32 %v468, 7
        %v470 = vsub.s32 0, %v469
        %v471 = vrot.slane %v467, %v470
        %473 = vbcast.lane.b32.xlu0 %v471, 256
        %v474 = vpop.permute.xlu0 %473
        %s476 = sor.u32 256, 8
        %477 = vbcast.lane.b32.xlu0 %v471, %s476
        %v478 = vpop.permute.xlu0 %477
        %v479 = vlaneseq
        %v480 = vshrl.u32 %v479, 7
        %v481 = vsub.s32 1, %v480
        %v482 = vrot.slane %v467, %v481
        %484 = vbcast.lane.b32.xlu0 %v482, 256
        %v485 = vpop.permute.xlu0 %484
        %s487 = sor.u32 256, 8
        %488 = vbcast.lane.b32.xlu0 %v482, %s487
        %v489 = vpop.permute.xlu0 %488
        %v490 = vmul.f32 %v246, %v474
        %v491 = vmul.f32 %v247, %v474
        %v492 = vmul.f32 %v248, %v478
        %v493 = vmul.f32 %v249, %v478
        %v494 = vmul.f32 %v250, %v485
        %v495 = vmul.f32 %v251, %v485
        %v496 = vmul.f32 %v252, %v489
        %v497 = vmul.f32 %v253, %v489
        %498 = vst [vmem:[%s243] sm:$0xff] %v490
        %499 = vst [vmem:[%s243 + $0x8] sm:$0xff] %v491
        %500 = vst [vmem:[%s243 + $0x10] sm:$0xff] %v492
        %501 = vst [vmem:[%s243 + $0x18] sm:$0xff] %v493
        %502 = vst [vmem:[%s243 + $0x20] sm:$0xff] %v494
        %503 = vst [vmem:[%s243 + $0x28] sm:$0xff] %v495
        %504 = vst [vmem:[%s243 + $0x30] sm:$0xff] %v496
        %505 = vst [vmem:[%s243 + $0x38] sm:$0xff] %v497
        %s506 = sand.u32 %s140, 1
        %s507 = scalar_lea.sflag [#allocation4], %s506
        %s508 = sand.u32 %s140, 1
        %s509 = smul.addr %s508, 64
        %s510 = scalar_lea.vmem [#allocation5], %s509
        // Predicated region
        $region45: #{tpu_custom_call.1} parent=39 // pred_check
          %p511 = pneg %p150
        $region46: #{tpu_custom_call.1} parent=39 // pred_check_branch
          %513 = sbr.rel (%p511) target = $region48
        $region47: #{tpu_custom_call.1} parent=39 // pred_region
          %s514 = smul.u32 2, %s22
          %s516 = ssub.s32 1024, 1024
          %517 = vsyncadd %s507, %s516
          %s518 = smul.addr %s514, 4
          %s519 = smul.addr %s518, 128
          %s520 = scalar_lea.hbm %s5, %s519
          %s521 = sshll.u32 %s510, 4
          %s522 = int_to_ptr.vmem [resolvable:$true] %s521
          %527 = dma.vmem_to_hbm [thread:$0]  %s522, 1024, %s520, %s507, 256, 256, 16
        $region48: #{tpu_custom_call.1} parent=39 // pred_fallthru
          _
      $region40: #{tpu_custom_call.1} parent=5 // pred_fallthru
        _
      %p528 = scmp.le.s32.totalorder 2, %s17
      // Predicated region
      $region49: #{tpu_custom_call.1} parent=5 // pred_check
        %p529 = pneg %p528
      $region50: #{tpu_custom_call.1} parent=5 // pred_check_branch
        %531 = sbr.rel (%p529) target = $region52
      $region51: #{tpu_custom_call.1} parent=5 // pred_region
        %s532 = ssub.s32 %s17, 2
        // Predicated region
        $region53: #{tpu_custom_call.1} parent=51 // pred_check
          %p533 = pneg %p156
        $region54: #{tpu_custom_call.1} parent=51 // pred_check_branch
          %535 = sbr.rel (%p533) target = $region56
        $region55: #{tpu_custom_call.1} parent=51 // pred_region
          %s536 = sand.u32 %s141, 1
          %s537 = scalar_lea.sflag [#allocation4], %s536
          %s538 = sand.u32 %s141, 1
          %s539 = smul.addr %s538, 64
          %s540 = scalar_lea.vmem [#allocation5], %s539
          %541 = dma.done %s537, 1024
        $region56: #{tpu_custom_call.1} parent=51 // pred_fallthru
          _
      $region52: #{tpu_custom_call.1} parent=5 // pred_fallthru
        _
    $region6: #{tpu_custom_call.1} parent=1 // loop_footer
      %s21 = sadd.s32 1, %s17
    $region7: #{tpu_custom_call.1} parent=1 // loop_footer_branch
      %16 = sbr.rel target = $region3
    $region8: #{tpu_custom_call.1} parent=1 // loop_exit
      _
    %542 = vsyncpa [#allocation3], 1
    %s543 = scalar_lea.sflag [#allocation3], 1
    %544 = vsyncpa %s543, 1
    %545 = vsyncpa [#allocation4], 1
    %s546 = scalar_lea.sflag [#allocation4], 1
    %547 = vsyncpa %s546, 1

</llo_original>
